<compile_context>
chip_gen: v7x
topology: tpu7x:2x2x1
jax: 0.10.0
libtpu: 0.0.40
codegen_flags: <defaults>
</compile_context>

<pallas_src>
import math

import jax
import jax.numpy as jnp
from jax.experimental import pallas as pl
from jax.experimental.pallas import tpu as pltpu


def _linear_with_repeat_kernel(x_ref, yb_ref, w1_ref, o_ref):
    # x_ref : (TB, TK, N1)  native dtype, cast to bf16 in-kernel
    # yb_ref: (TB, 1, OUT)  f32 precomputed y @ W2 + bias (broadcast over K)
    # w1_ref: (N1, OUT)     bf16 resident weight slice (constant index map)
    # o_ref : (TB, TK, OUT)
    tb, tk, n1 = x_ref.shape
    out_f = o_ref.shape[-1]
    x2d = x_ref[...].astype(jnp.bfloat16).reshape(tb * tk, n1)
    acc = jnp.dot(x2d, w1_ref[...], preferred_element_type=jnp.float32)  # (TB*TK, OUT)
    acc = acc.reshape(tb, tk, out_f) + yb_ref[...]                       # f32 epilogue
    o_ref[...] = acc.astype(o_ref.dtype)


def _derive_tiles(B, K, N1, OUT, rows_per_tile, vmem_block_budget):
    # TK: the full K extent if one tile covers it (block dim == full array dim
    # satisfies the (8,128) rule), otherwise a multiple of 8.
    if K <= rows_per_tile:
        TK = K
    else:
        TK = max(8, (rows_per_tile // 8) * 8)
    TB = min(B, max(1, rows_per_tile // max(TK, 1)))
    # Keep the in-kernel (TB, TK) -> (TB*TK) collapse layout-trivial: only merge
    # the batch dim into sublanes when TK is a sublane multiple.
    if TK % 8 != 0:
        TB = 1

    def vmem_bytes(tb, tk):
        x_blk = tb * tk * N1 * 4            # input block (<= f32)
        o_blk = tb * tk * OUT * 4           # output block (<= f32)
        y_blk = tb * OUT * 4
        w_blk = N1 * OUT * 2
        dbl = 2 * (x_blk + o_blk + y_blk + w_blk)   # double-buffered pipeline bufs
        tmp = tb * tk * (N1 * 2 + OUT * 4)          # bf16 x copy + f32 acc
        return dbl + tmp

    while vmem_bytes(TB, TK) > vmem_block_budget:
        if TB > 1:
            TB = max(1, TB // 2)
        elif TK > 8:
            TK = max(8, ((TK // 2) // 8) * 8)
        else:
            break
    return TB, TK, vmem_bytes(TB, TK)


def linear_with_repeat(x, y, weight, bias, *, rows_per_tile=2048,
                       vmem_block_budget=24 * 1024 * 1024, out_dtype=None):
    """x: (B, K, N1), y: (B, N2), weight: (OUT, N1+N2), bias: (OUT,) -> (B, K, OUT)."""
    B, K, N1 = x.shape
    OUT = weight.shape[0]
    if out_dtype is None:
        out_dtype = x.dtype   # caller may pass jnp.bfloat16 to halve output HBM bytes

    # ---- plain-JAX glue: split weight, hoist the y path into one small f32 GEMM ----
    w1 = jnp.transpose(weight[:, :N1]).astype(jnp.bfloat16)               # (N1, OUT)
    w2 = jnp.transpose(weight[:, N1:]).astype(jnp.float32)                # (N2, OUT)
    yb = jnp.dot(y.astype(jnp.float32), w2) + bias.astype(jnp.float32)    # (B, OUT) f32
    yb = yb[:, None, :]                                                   # (B, 1, OUT)

    TB, TK, est_vmem = _derive_tiles(B, K, N1, OUT, rows_per_tile, vmem_block_budget)
    grid = (pl.cdiv(B, TB), pl.cdiv(K, TK))

    itemsize_out = jnp.dtype(out_dtype).itemsize
    cost = pl.CostEstimate(
        flops=2 * B * K * N1 * OUT,
        transcendentals=0,
        bytes_accessed=(B * K * N1 * jnp.dtype(x.dtype).itemsize   # x (native dtype)
                        + B * OUT * 4                              # yb (f32)
                        + N1 * OUT * 2                             # W1 (bf16)
                        + B * K * OUT * itemsize_out),             # out
    )

    # Raise v5e's 16 MiB default scoped limit when needed; stays within v7x's
    # 64 MiB physical VMEM.
    vmem_limit = int(min(48 * 1024 * 1024, max(32 * 1024 * 1024, 2 * est_vmem)))

    return pl.pallas_call(
        _linear_with_repeat_kernel,
        out_shape=jax.ShapeDtypeStruct((B, K, OUT), out_dtype),
        grid_spec=pltpu.PrefetchScalarGridSpec(
            num_scalar_prefetch=0,
            grid=grid,
            in_specs=[
                pl.BlockSpec((TB, TK, N1), lambda bi, ki: (bi, ki, 0)),
                pl.BlockSpec((TB, 1, OUT), lambda bi, ki: (bi, 0, 0)),
                pl.BlockSpec((N1, OUT), lambda bi, ki: (0, 0)),
            ],
            out_specs=pl.BlockSpec((TB, TK, OUT), lambda bi, ki: (bi, ki, 0)),
        ),
        compiler_params=pltpu.CompilerParams(
            dimension_semantics=("parallel", "parallel"),
            vmem_limit_bytes=vmem_limit),
        cost_estimate=cost,
    )(x, yb, w1)


def _reference(x, y, weight, bias):
    n1 = x.shape[-1]
    out1 = jnp.einsum("bkn,on->bko", x, weight[:, :n1]) + bias
    out2 = jnp.einsum("bn,on->bo", y, weight[:, n1:])
    return out1 + out2[:, None, :]


if __name__ == "__main__":
    # Small shapes consistent with the module's forward.
    B, K, N1, N2, OUT = 2, 8, 32, 16, 64
    in_features = N1 + N2

    key = jax.random.PRNGKey(0)
    kx, ky, kw, kb = jax.random.split(key, 4)

    # Deterministic init mimicking torch.nn.Linear.reset_parameters:
    # kaiming_uniform_(a=sqrt(5)) -> U(-1/sqrt(fan_in), 1/sqrt(fan_in)), same for bias.
    fan_in = in_features
    bound = 1.0 / math.sqrt(fan_in)
    weight = jax.random.uniform(kw, (OUT, in_features), jnp.float32, -bound, bound)
    bias = jax.random.uniform(kb, (OUT,), jnp.float32, -bound, bound)

    x = jax.random.normal(kx, (B, K, N1), jnp.float32)
    y = jax.random.normal(ky, (B, N2), jnp.float32)

    out = linear_with_repeat(x, y, weight, bias)
    out = jax.block_until_ready(out)

    ref = _reference(x, y, weight, bias)
    assert out.shape == (B, K, OUT)
    # bf16 MXU operands with f32 accumulation -> loosened tolerance vs f32 reference.
    assert jnp.allclose(out, ref, atol=3e-2, rtol=3e-2), "mismatch vs reference"

    print("KERNEL_OK")
</pallas_src>

<mosaic_0001>
module attributes {stable_mosaic.version = 11 : i64} {
  func.func @_linear_with_repeat_kernel(%arg0: i32, %arg1: i32, %arg2: memref<2x8x32xf32, #tpu.memory_space<vmem>>, %arg3: memref<2x1x64xf32, #tpu.memory_space<vmem>>, %arg4: memref<32x64xbf16, #tpu.memory_space<vmem>>, %arg5: memref<2x8x64xf32, #tpu.memory_space<vmem>>) attributes {dimension_semantics = [#tpu.dimension_semantics<parallel>, #tpu.dimension_semantics<parallel>], iteration_bounds = array<i64: 1, 1>, scalar_prefetch = 0 : i64, scratch_operands = 0 : i64, tpu.core_type = #tpu.core_type<tc>, window_params = [{transform_indices = @transform_0, window_bounds = array<i64: 2, 8, 32>}, {transform_indices = @transform_1, window_bounds = array<i64: 2, 1, 64>}, {pipeline_mode = #tpu.pipeline_mode<synchronous>, transform_indices = @transform_2, window_bounds = array<i64: 32, 64>}, {transform_indices = @transform_3, window_bounds = array<i64: 2, 8, 64>}]} {
    %c0 = arith.constant 0 : index
    %c0_0 = arith.constant 0 : index
    %c0_1 = arith.constant 0 : index
    %0 = vector.load %arg2[%c0, %c0_0, %c0_1] : memref<2x8x32xf32, #tpu.memory_space<vmem>>, vector<2x8x32xf32>
    %1 = arith.truncf %0 : vector<2x8x32xf32> to vector<2x8x32xbf16>
    %2 = vector.shape_cast %1 : vector<2x8x32xbf16> to vector<16x32xbf16>
    %c0_2 = arith.constant 0 : index
    %c0_3 = arith.constant 0 : index
    %3 = vector.load %arg4[%c0_2, %c0_3] : memref<32x64xbf16, #tpu.memory_space<vmem>>, vector<32x64xbf16>
    %cst = arith.constant dense<0.000000e+00> : vector<16x64xf32>
    %4 = tpu.matmul %2, %3, %cst {dimension_numbers = #tpu.dot_dimension_numbers<[1], [0], [0], [1], [0, 0, 1, 1], [], []>} : vector<16x32xbf16>, vector<32x64xbf16>, vector<16x64xf32> -> vector<16x64xf32>
    %5 = vector.shape_cast %4 : vector<16x64xf32> to vector<2x8x64xf32>
    %c0_4 = arith.constant 0 : index
    %c0_5 = arith.constant 0 : index
    %c0_6 = arith.constant 0 : index
    %6 = vector.load %arg3[%c0_4, %c0_5, %c0_6] : memref<2x1x64xf32, #tpu.memory_space<vmem>>, vector<2x1x64xf32>
    %7 = vector.broadcast %6 : vector<2x1x64xf32> to vector<2x8x64xf32>
    %8 = arith.addf %5, %7 : vector<2x8x64xf32>
    %c0_7 = arith.constant 0 : index
    %c0_8 = arith.constant 0 : index
    %c0_9 = arith.constant 0 : index
    %9 = vector.load %arg5[%c0_7, %c0_8, %c0_9] : memref<2x8x64xf32, #tpu.memory_space<vmem>>, vector<2x8x64xf32>
    tpu.vector_store %arg5[%c0_7, %c0_8, %c0_9], %8 {strides = array<i32>} : memref<2x8x64xf32, #tpu.memory_space<vmem>>, vector<2x8x64xf32>,
    return
  }
  func.func @transform_0(%arg0: i32, %arg1: i32) -> (i32, i32, i32) {
    %c0_i32 = arith.constant 0 : i32
    %c0_i32_0 = arith.constant 0 : i32
    return %arg0, %arg1, %c0_i32 : i32, i32, i32
  }
  func.func @transform_1(%arg0: i32, %arg1: i32) -> (i32, i32, i32) {
    %c0_i32 = arith.constant 0 : i32
    %c0_i32_0 = arith.constant 0 : i32
    %c0_i32_1 = arith.constant 0 : i32
    return %arg0, %c0_i32, %c0_i32_0 : i32, i32, i32
  }
  func.func @transform_2(%arg0: i32, %arg1: i32) -> (i32, i32) {
    %c0_i32 = arith.constant 0 : i32
    %c0_i32_0 = arith.constant 0 : i32
    %c0_i32_1 = arith.constant 0 : i32
    return %c0_i32, %c0_i32_0 : i32, i32
  }
  func.func @transform_3(%arg0: i32, %arg1: i32) -> (i32, i32, i32) {
    %c0_i32 = arith.constant 0 : i32
    %c0_i32_0 = arith.constant 0 : i32
    return %arg0, %arg1, %c0_i32 : i32, i32, i32
  }
}

</mosaic_0001>

<llo_original>
// kernel: tpu_custom_call.1
$region0: #{tpu_custom_call.1}
  #allocation0 [shape = 'u32[]', space=smem, size = 0x4, offset = 0x4, fixed_abs, tag = 'smem constant byte address 0x4 - core index']
  #allocation1 [shape = 'u32[144,128]{1,0:T(1,128)}', space=vmem, size = 0x12000, scoped, tag = 'internal scratch']
  %s0 = inlined_call_operand.hbm [shape: f32[2,8,32], index: 0, kind: input, shape index: {}]
  %s1 = inlined_call_operand.vmem [shape: f32[2,1,64], index: 1, kind: input, shape index: {}]
  %s2 = inlined_call_operand.hbm [shape: bf16[32,64], index: 2, kind: input, shape index: {}]
  %s3 = inlined_call_operand.hbm [shape: f32[2,8,64], index: 3, kind: output, shape index: {}]
  %s4 = sld [smem:[#allocation0]]
  $region30: #{tpu_custom_call.1} parent=0
    _
  %s6 = ssub.s32 1, %s4
  %s7 = scalar_select 0, %s6, %s4
  $region1: #{tpu_custom_call.1} parent=0
    #allocation2 [shape = 'u8[8192]{0}', space=vmem, size = 0x2000, scoped, tag = 'input window, operand 0, single buffered']
    #allocation3 [shape = 's32[1]{0}', space=sflag, size = 0x4, scoped, tag = 'scoped memory for tpu_custom_call.1']
    #allocation4 [shape = 's32[1]{0}', space=sflag, size = 0x4, scoped, tag = 'scoped memory for tpu_custom_call.1']
    #allocation5 [shape = 'u8[8192]{0}', space=vmem, size = 0x2000, scoped, tag = 'input window, operand 2, single buffered']
    #allocation6 [shape = 's32[1]{0}', space=sflag, size = 0x4, scoped, tag = 'scoped memory for tpu_custom_call.1']
    #allocation7 [shape = 'u8[8192]{0}', space=vmem, size = 0x2000, scoped, tag = 'output window, operand 0, single buffered']
    %8 = vsyncpa [#allocation3], 0
    %9 = vsyncpa [#allocation6], 0
    %10 = vsyncpa [#allocation4], 0
    // Predicated region
    $region2: #{tpu_custom_call.1} parent=1 // pred_check
      _
    $region3: #{tpu_custom_call.1} parent=1 // pred_check_branch
      %12 = sbr.rel (0) target = $region5
    $region4: #{tpu_custom_call.1} parent=1 // pred_region
      %s14 = ssub.s32 256, 256
      %15 = vsyncadd [#allocation3], %s14
      %s16 = sshll.u32 [#allocation2], 4
      %s17 = int_to_ptr.vmem [resolvable:$true] %s16
      %22 = dma.hbm_to_vmem [thread:$0]  %s0, 256, %s17, [#allocation3], 128, 128, 8
    $region5: #{tpu_custom_call.1} parent=1 // pred_fallthru
      _
    // Predicated region
    $region6: #{tpu_custom_call.1} parent=1 // pred_check
      _
    $region7: #{tpu_custom_call.1} parent=1 // pred_check_branch
      %24 = sbr.rel (0) target = $region9
    $region8: #{tpu_custom_call.1} parent=1 // pred_region
      _
    $region9: #{tpu_custom_call.1} parent=1 // pred_fallthru
      _
    // Predicated region
    $region10: #{tpu_custom_call.1} parent=1 // pred_check
      _
    $region11: #{tpu_custom_call.1} parent=1 // pred_check_branch
      %26 = sbr.rel (0) target = $region13
    $region12: #{tpu_custom_call.1} parent=1 // pred_region
      %s28 = ssub.s32 256, 256
      %29 = vsyncadd [#allocation6], %s28
      %s30 = sshll.u32 [#allocation5], 4
      %s31 = int_to_ptr.vmem [resolvable:$true] %s30
      %36 = dma.hbm_to_vmem [thread:$0]  %s2, 256, %s31, [#allocation6], 64, 64, 4
    $region13: #{tpu_custom_call.1} parent=1 // pred_fallthru
      _
    // Predicated region
    $region14: #{tpu_custom_call.1} parent=1 // pred_check
      _
    $region15: #{tpu_custom_call.1} parent=1 // pred_check_branch
      %38 = sbr.rel (0) target = $region17
    $region16: #{tpu_custom_call.1} parent=1 // pred_region
      %39 = dma.done [#allocation3], 256
    $region17: #{tpu_custom_call.1} parent=1 // pred_fallthru
      _
    // Predicated region
    $region18: #{tpu_custom_call.1} parent=1 // pred_check
      _
    $region19: #{tpu_custom_call.1} parent=1 // pred_check_branch
      %41 = sbr.rel (0) target = $region21
    $region20: #{tpu_custom_call.1} parent=1 // pred_region
      %42 = dma.done [#allocation6], 256
    $region21: #{tpu_custom_call.1} parent=1 // pred_fallthru
      _
    %v44 = vld [vmem:[#allocation2] sm:$0xff]
    %v45 = vld [vmem:[#allocation2 + $0x8] sm:$0xff]
    %v46 = vpack.c.bf16 %v44, %v44
    %v47 = vpack.c.bf16 %v45, %v45
    %v48 = vld [vmem:[#allocation5] sm:$0xf]
    %v49 = vld [vmem:[#allocation5 + $0x4] sm:$0xf]
    %v50 = vld [vmem:[#allocation5 + $0x8] sm:$0xf]
    %v51 = vld [vmem:[#allocation5 + $0xc] sm:$0xf]
    %v54 = vunpack.c.l.b16 %v46
    %v55 = vunpack.c.l.b16 %v47
    %v56 = vpack.c.b16 %v55, %v54
    %v61 = vunpack.c.l.b16 %v48
    %v62 = vunpack.c.l.b16 %v49
    %v63 = vunpack.c.l.b16 %v50
    %v64 = vunpack.c.l.b16 %v51
    %v65 = vpack.c.b16 %v62, %v61
    %v66 = vpack.c.b16 %v64, %v63
    %vm69 = vcmask 261120
    %v71 = vsel %vm69, %v56, 0
    %73 = vmatprep.subr.bf16.mxu0 0
    %74 = vmatpush1.bf16.msra.mxu0 %v65
    %75 = vmatprep.subr.bf16.mxu0 0
    %76 = vmatpush1.bf16.msra.mxu0 %v66
    %77 = vmatprep.subr.bf16.mxu0 0
    %78 = vmatpush1.bf16.msra.mxu0 0
    %79 = vmatprep.subr.bf16.mxu0 0
    %80 = vmatpush1.bf16.msra.mxu0 0
    %81 = vmatprep.subr.bf16.mxu0 0
    %82 = vmatpush1.bf16.msra.mxu0 0
    %83 = vmatprep.subr.bf16.mxu0 0
    %84 = vmatpush1.bf16.msra.mxu0 0
    %85 = vmatprep.subr.bf16.mxu0 0
    %86 = vmatpush1.bf16.msra.mxu0 0
    %87 = vmatprep.subr.bf16.mxu0 0
    %88 = vmatpush1.bf16.msra.mxu0 0
    %89 = vmatprep.subr.bf16.mxu0 0
    %90 = vmatpush1.bf16.msra.mxu0 0
    %91 = vmatprep.subr.bf16.mxu0 0
    %92 = vmatpush1.bf16.msra.mxu0 0
    %93 = vmatprep.subr.bf16.mxu0 0
    %94 = vmatpush1.bf16.msra.mxu0 0
    %95 = vmatprep.subr.bf16.mxu0 0
    %96 = vmatpush1.bf16.msra.mxu0 0
    %97 = vmatprep.subr.bf16.mxu0 0
    %98 = vmatpush1.bf16.msra.mxu0 0
    %99 = vmatprep.subr.bf16.mxu0 0
    %100 = vmatpush1.bf16.msra.mxu0 0
    %101 = vmatprep.subr.bf16.mxu0 0
    %102 = vmatpush1.bf16.msra.mxu0 0
    %103 = vmatprep.subr.bf16.mxu0 0
    %104 = vmatpush1.bf16.msra.mxu0 0
    %105 = vmatprep.mubr.bf16.mxu0 0
    %106 = vmatmul.mubr.bf16.gmra.mrb[0].mxu0 %v71
    %v107 = vpop.f32.mrb[0].mxu0
    %v108 = vadd.f32 0.0, %v107
    %v109 = vpop.f32.mrb[0].mxu0
    %v110 = vpop.f32.mrb[0].mxu0
    %v111 = vadd.f32 0.0, %v110
    %v112 = vpop.f32.mrb[0].mxu0
    %113 = vdwg.mxu0
    %v114 = vld [vmem:[%s1] sm:$0x1]
    %v115 = vld [vmem:[%s1 + $0x1] sm:$0x1]
    %v118 = vlaneseq
    %v119 = vshrl.u32 %v118, 7
    %v120 = vsub.s32 0, %v119
    %v121 = vrot.slane %v114, %v120
    %v122 = vlaneseq
    %v123 = vshrl.u32 %v122, 7
    %v124 = vsub.s32 0, %v123
    %v125 = vrot.slane %v115, %v124
    %v128 = vadd.f32 %v108, %v121
    %v129 = vadd.f32 %v111, %v125
    %vm130 = vcmask 523264
    %131 = vst.msk [vmem:[#allocation7] sm:$0xff] %vm130, %v128
    %132 = vst.msk [vmem:[#allocation7 + $0x8] sm:$0xff] %vm130, %v129
    // Predicated region
    $region22: #{tpu_custom_call.1} parent=1 // pred_check
      _
    $region23: #{tpu_custom_call.1} parent=1 // pred_check_branch
      %134 = sbr.rel (0) target = $region25
    $region24: #{tpu_custom_call.1} parent=1 // pred_region
      %s136 = ssub.s32 256, 256
      %137 = vsyncadd [#allocation4], %s136
      %s138 = sshll.u32 [#allocation7], 4
      %s139 = int_to_ptr.vmem [resolvable:$true] %s138
      %144 = dma.vmem_to_hbm [thread:$0]  %s139, 256, %s3, [#allocation4], 128, 128, 8
    $region25: #{tpu_custom_call.1} parent=1 // pred_fallthru
      _
    // Predicated region
    $region26: #{tpu_custom_call.1} parent=1 // pred_check
      _
    $region27: #{tpu_custom_call.1} parent=1 // pred_check_branch
      %146 = sbr.rel (0) target = $region29
    $region28: #{tpu_custom_call.1} parent=1 // pred_region
      %147 = dma.done [#allocation4], 256
    $region29: #{tpu_custom_call.1} parent=1 // pred_fallthru
      _
    %148 = vsyncpa [#allocation3], 1
    %149 = vsyncpa [#allocation6], 1
    %150 = vsyncpa [#allocation4], 1

</llo_original>
